<compile_context>
chip_gen: v7x
topology: tpu7x:2x2x1
jax: 0.10.0
libtpu: 0.0.40
codegen_flags: <defaults>
</compile_context>

<pallas_src>
import jax
import jax.numpy as jnp
from jax.experimental import pallas as pl
from jax.experimental.pallas import tpu as pltpu


def _ceil_to(x, m):
    return ((x + m - 1) // m) * m


# ----------------------------------------------------------------------------
# Pallas kernels
# ----------------------------------------------------------------------------
def _matmul_bias_kernel(a_ref, b_ref, bias_ref, o_ref):
    acc = jnp.dot(a_ref[...], b_ref[...], preferred_element_type=jnp.float32)
    o_ref[...] = (acc + bias_ref[...]).astype(o_ref.dtype)


def matmul_bias(a, b, bias, *, tm=256, out_dtype=jnp.bfloat16):
    """(M,K) @ (K,N) + bias[N].  bf16 MXU operands, f32 accumulate, out_dtype store."""
    M, K = a.shape
    N = b.shape[1]
    tm = min(tm, _ceil_to(M, 16))
    Mp = _ceil_to(M, tm)
    a = jnp.pad(a.astype(jnp.bfloat16), ((0, Mp - M), (0, 0)))
    b = b.astype(jnp.bfloat16)
    bias = bias.reshape(1, N).astype(jnp.float32)
    out = pl.pallas_call(
        _matmul_bias_kernel,
        out_shape=jax.ShapeDtypeStruct((Mp, N), out_dtype),
        grid=(Mp // tm,),
        in_specs=[
            pl.BlockSpec((tm, K), lambda i: (i, 0)),
            pl.BlockSpec((K, N), lambda i: (0, 0)),
            pl.BlockSpec((1, N), lambda i: (0, 0)),
        ],
        out_specs=pl.BlockSpec((tm, N), lambda i: (i, 0)),
        compiler_params=pltpu.CompilerParams(dimension_semantics=("parallel",)),
    )(a, b, bias)
    return out[:M]


def conv3x3_bn_stats(slab, mask, w_packed, *, wrow, tm, th, k_chunk=512,
                     out_dtype=jnp.bfloat16):
    """Fused 3x3 conv (padding=1, bias=False) + per-channel BN statistics.

    slab:     (R_tot, Cin) bf16 padded-NHWC slab, zero halos / borders.
    mask:     (R_tot, 1)   f32, 1.0 exactly at interior pixel rows.
    w_packed: (9, Cin, Cout) bf16, tap index t = ki*3 + kj.
    wrow:     padded image row width -> defines the 9 tap row offsets.

    Returns (y, sum, sum_sq):
      y:   (R_tot, Cout) bf16 conv output (border/pad rows forced to 0).
      sum, sum_sq: (16, Cout) f32; rows 0 and 8 hold the two TensorCore partials
           accumulated over the N*H*W interior pixels (other rows are zero).
    """
    R_tot, Cin = slab.shape
    Cout = w_packed.shape[2]
    assert tm % th == 0 and th % 16 == 0 and th >= wrow + 1
    n_core = R_tot // tm - 2
    assert n_core % 2 == 0 and n_core >= 2
    n_half = n_core // 2
    ratio = tm // th

    # --- input-channel (K) tiling so the resident weight fits v7x's 64 MiB VMEM
    ck = 128
    c = min(Cin, _ceil_to(k_chunk, 128))
    while c >= 128:
        if Cin % c == 0:
            ck = c
            break
        c -= 128
    nk = Cin // ck

    deltas = [(ki - 1) * wrow + (kj - 1) for ki in range(3) for kj in range(3)]
    assert max(abs(d) for d in deltas) <= th

    def body(x_lo, x_mid, x_hi, m_ref, w_ref, y_ref, ssum_ref, ssq_ref,
             acc_ref=None):
        i = pl.program_id(1)
        k = pl.program_id(2)

        @pl.when(jnp.logical_and(i == 0, k == 0))
        def _init_stats():
            ssum_ref[...] = jnp.zeros_like(ssum_ref)
            ssq_ref[...] = jnp.zeros_like(ssq_ref)

        # bf16 window with a thin +-th row halo (no f32 round trip, no 3x re-read).
        win = jnp.concatenate([x_lo[...], x_mid[...], x_hi[...]], axis=0)

        if nk == 1:
            acc = jnp.zeros((tm, Cout), jnp.float32)
        else:
            @pl.when(k == 0)
            def _init_acc():
                acc_ref[...] = jnp.zeros_like(acc_ref)
            acc = acc_ref[...]

        # TODO(synk): fold the 3 kj taps into one K=3*Cin matmul (v6e/v7x MXU fill).
        for t, d in enumerate(deltas):                        # unrolled, static offsets
            acc = acc + jnp.dot(win[th + d:th + tm + d, :], w_ref[t],
                                preferred_element_type=jnp.float32)

        def finish(a):
            accf = jnp.where(m_ref[...] > 0.0, a, 0.0)        # zero border/pad rows
            y_ref[...] = accf.astype(y_ref.dtype)
            ssum_ref[0:1, :] += jnp.sum(accf, axis=0, keepdims=True)
            # TODO(synk): sum-of-squares variance is cancellation-prone for large means.
            ssq_ref[0:1, :] += jnp.sum(accf * accf, axis=0, keepdims=True)

        if nk == 1:
            finish(acc)
        else:
            acc_ref[...] = acc

            @pl.when(k == nk - 1)
            def _fin():
                finish(acc_ref[...])

    scratch = [] if nk == 1 else [pltpu.VMEM((tm, Cout), jnp.float32)]

    def mid_map(p, i, k):
        return (p * n_half + i + 1, k)

    def lo_map(p, i, k):
        return ((p * n_half + i + 1) * ratio - 1, k)

    def hi_map(p, i, k):
        return ((p * n_half + i + 2) * ratio, k)

    def mask_map(p, i, k):
        return (p * n_half + i + 1, 0)

    def w_map(p, i, k):
        return (0, k, 0)

    def y_map(p, i, k):
        return (p * n_half + i + 1, 0)

    def stat_map(p, i, k):
        return (p, 0)

    # VMEM footprint estimate -> explicit scoped-VMEM limit (default 16/32 MiB
    # would throttle the large lane-dense tiles on v5e/v6e).
    est = 2 * (tm * ck * 2              # mid block (bf16, double buffered)
               + 2 * th * ck * 2        # thin lo/hi halo blocks
               + tm * 4                 # mask
               + 9 * ck * Cout * 2      # weight chunk
               + tm * Cout * 2          # y out (bf16)
               + 2 * 8 * Cout * 4)      # ssum/ssq blocks
    est += (tm + 2 * th) * ck * 2       # concatenated window
    est += 2 * tm * Cout * 4            # f32 accumulator (live value + scratch)
    vmem_limit = int(min(max(est + (4 << 20), 32 << 20), 100 << 20))

    return pl.pallas_call(
        body,
        out_shape=(jax.ShapeDtypeStruct((R_tot, Cout), out_dtype),
                   jax.ShapeDtypeStruct((16, Cout), jnp.float32),
                   jax.ShapeDtypeStruct((16, Cout), jnp.float32)),
        grid=(2, n_half, nk),
        in_specs=[
            pl.BlockSpec((th, ck), lo_map),
            pl.BlockSpec((tm, ck), mid_map),
            pl.BlockSpec((th, ck), hi_map),
            pl.BlockSpec((tm, 1), mask_map),
            pl.BlockSpec((9, ck, Cout), w_map),
        ],
        out_specs=(
            pl.BlockSpec((tm, Cout), y_map),
            pl.BlockSpec((8, Cout), stat_map),
            pl.BlockSpec((8, Cout), stat_map),
        ),
        scratch_shapes=scratch,
        compiler_params=pltpu.CompilerParams(
            dimension_semantics=("parallel", "arbitrary", "arbitrary"),
            vmem_limit_bytes=vmem_limit),
    )(slab, slab, slab, mask, w_packed)


def bn_relu_apply(y, mask, scale, bias, *, tm, out_dtype):
    """out = mask ? relu(y*scale + bias) : 0   (single full-slab pass, bf16 in)."""
    R_tot, C = y.shape
    nb = R_tot // tm

    def kernel(y_ref, m_ref, s_ref, b_ref, o_ref):
        v = jnp.maximum(y_ref[...].astype(jnp.float32) * s_ref[...] + b_ref[...], 0.0)
        o_ref[...] = jnp.where(m_ref[...] > 0.0, v, 0.0).astype(o_ref.dtype)

    # Halo row-blocks of y were never written by the conv kernel; clamp the
    # input index so we never read uninitialized HBM (outputs there are masked
    # to zero anyway via the mask).
    def y_map(i):
        return (jnp.clip(i, 1, nb - 2), 0)

    est = 2 * (tm * C * y.dtype.itemsize + tm * 4 + 2 * C * 4
               + tm * C * jnp.dtype(out_dtype).itemsize)
    return pl.pallas_call(
        kernel,
        out_shape=jax.ShapeDtypeStruct((R_tot, C), out_dtype),
        grid=(nb,),
        in_specs=[
            pl.BlockSpec((tm, C), y_map),
            pl.BlockSpec((tm, 1), lambda i: (i, 0)),
            pl.BlockSpec((1, C), lambda i: (0, 0)),
            pl.BlockSpec((1, C), lambda i: (0, 0)),
        ],
        out_specs=pl.BlockSpec((tm, C), lambda i: (i, 0)),
        compiler_params=pltpu.CompilerParams(
            dimension_semantics=("parallel",),
            vmem_limit_bytes=int(min(max(est + (4 << 20), 32 << 20), 100 << 20))),
    )(y, mask, scale, bias)


# ----------------------------------------------------------------------------
# Glue: slab builders, weight packing, BN fold
# ----------------------------------------------------------------------------
def _build_slab(x_nhwc, wrow, tm, Rcp):
    N, H, W, C = x_nhwc.shape
    Cp = _ceil_to(C, 128)
    xp = jnp.pad(x_nhwc.astype(jnp.bfloat16),
                 ((0, 0), (1, 1), (1, wrow - W - 1), (0, Cp - C)))
    core = xp.reshape(N * (H + 2) * wrow, Cp)
    return jnp.pad(core, ((tm, Rcp - core.shape[0] + tm), (0, 0)))


def _build_mask(N, H, W, wrow, tm, Rcp):
    m = jnp.zeros((N, H + 2, wrow), jnp.float32)
    m = m.at[:, 1:H + 1, 1:W + 1].set(1.0)
    core = m.reshape(N * (H + 2) * wrow, 1)
    return jnp.pad(core, ((tm, Rcp - core.shape[0] + tm), (0, 0)))


def _pack_conv3x3_weight(w):
    Co, Ci = w.shape[0], w.shape[1]
    Cpi, Cpo = _ceil_to(Ci, 128), _ceil_to(Co, 128)
    wk = jnp.transpose(w, (2, 3, 1, 0)).reshape(9, Ci, Co)   # t = ki*3 + kj
    wk = jnp.pad(wk, ((0, 0), (0, Cpi - Ci), (0, Cpo - Co)))
    return wk.astype(jnp.bfloat16)


def _pad_vec(v, Cp):
    return jnp.pad(v, (0, Cp - v.shape[0])).reshape(1, Cp).astype(jnp.float32)


def _bn_fold(s_sum, s_sq, gamma_p, beta_p, count, eps=1e-5):
    s_sum = jnp.sum(s_sum, axis=0, keepdims=True)            # reduce TC partials
    s_sq = jnp.sum(s_sq, axis=0, keepdims=True)
    mean = s_sum / count
    var = jnp.maximum(s_sq / count - mean * mean, 0.0)        # biased (training) var
    scale = gamma_p * jax.lax.rsqrt(var + eps)
    bias = beta_p - mean * scale
    return scale, bias


def _slab_to_nchw(slab, N, H, W, C, wrow, tm):
    P = (H + 2) * wrow
    core = slab[tm:tm + N * P, :C].reshape(N, H + 2, wrow, C)
    return jnp.transpose(core[:, 1:H + 1, 1:W + 1, :], (0, 3, 1, 2)).astype(jnp.float32)


# ----------------------------------------------------------------------------
# Module pieces
# ----------------------------------------------------------------------------
def conv_transpose_2x2_s2(x, w, b):
    """nn.ConvTranspose2d(kernel_size=2, stride=2).  x: NCHW, w: (Cin,Cout,2,2).
    Returns bf16 NHWC output."""
    N, Ci, H, W = x.shape
    Co = w.shape[1]
    a = jnp.transpose(x, (0, 2, 3, 1)).reshape(N * H * W, Ci)
    Kp = _ceil_to(Ci, 128)
    Nreal = 4 * Co
    Np = _ceil_to(Nreal, 128)                                 # lane-dense output width
    a = jnp.pad(a, ((0, 0), (0, Kp - Ci)))
    bmat = jnp.transpose(w, (0, 2, 3, 1)).reshape(Ci, Nreal)  # col = (ki*2+kj)*Co + co
    bmat = jnp.pad(bmat, ((0, Kp - Ci), (0, Np - Nreal)))
    bias = jnp.pad(jnp.tile(b, 4), (0, Np - Nreal))
    y = matmul_bias(a, bmat, bias, out_dtype=jnp.bfloat16)[:, :Nreal]
    y = y.reshape(N, H, W, 2, 2, Co)
    # out[n, 2h+ki, 2w+kj, co] = sum_ci x[n,h,w,ci] * w[ci,co,ki,kj] + b[co]
    return jnp.transpose(y, (0, 1, 3, 2, 4, 5)).reshape(N, 2 * H, 2 * W, Co)


def double_conv(x_nhwc, params, *, k_chunk=512):
    """DoubleConv: [conv3x3 -> BN(train) -> ReLU] x 2, all on the padded slab."""
    N, H, W, Cin_raw = x_nhwc.shape
    count = float(N * H * W)
    c1 = params["conv1_w"].shape[0]
    c2 = params["conv2_w"].shape[0]
    c1p, c2p = _ceil_to(c1, 128), _ceil_to(c2, 128)
    cinp = _ceil_to(Cin_raw, 128)

    # Sublane-align the +-wrow tap shifts; use the bf16-friendly 16 alignment
    # when the extra zero-row bandwidth is negligible.
    row_align = 16 if (W + 2) >= 64 else 8
    wrow = _ceil_to(W + 2, row_align)
    th = _ceil_to(wrow + 1, 16)                  # thin halo block height
    # Smaller row blocks when channel counts are large so double buffering fits
    # v7x's 64 MiB VMEM; large lane-dense blocks otherwise.
    tm_target = 256 if max(cinp, c1p, c2p) > 256 else 512
    tm = th * max(2, tm_target // th)

    Rc = N * (H + 2) * wrow
    n_core = 2 * max(1, -(-Rc // (2 * tm)))      # even #blocks -> 2-way parallel split
    Rcp = n_core * tm

    mask = _build_mask(N, H, W, wrow, tm, Rcp)

    # conv1 + fused BN stats, then one apply pass (-> bf16 input for conv2)
    slab0 = _build_slab(x_nhwc, wrow, tm, Rcp)
    y1, s1, q1 = conv3x3_bn_stats(slab0, mask,
                                  _pack_conv3x3_weight(params["conv1_w"]),
                                  wrow=wrow, tm=tm, th=th, k_chunk=k_chunk)
    sc1, bi1 = _bn_fold(s1, q1, _pad_vec(params["bn1_gamma"], c1p),
                        _pad_vec(params["bn1_beta"], c1p), count)
    slab1 = bn_relu_apply(y1, mask, sc1, bi1, tm=tm, out_dtype=jnp.bfloat16)

    # conv2 + fused BN stats, then apply (-> f32 output)
    y2, s2, q2 = conv3x3_bn_stats(slab1, mask,
                                  _pack_conv3x3_weight(params["conv2_w"]),
                                  wrow=wrow, tm=tm, th=th, k_chunk=k_chunk)
    sc2, bi2 = _bn_fold(s2, q2, _pad_vec(params["bn2_gamma"], c2p),
                        _pad_vec(params["bn2_beta"], c2p), count)
    slab2 = bn_relu_apply(y2, mask, sc2, bi2, tm=tm, out_dtype=jnp.float32)

    return _slab_to_nchw(slab2, N, H, W, c2, wrow, tm)


def upsample_forward(params, x1, *skips):
    up = conv_transpose_2x2_s2(x1, params["up_w"], params["up_b"])   # NHWC bf16
    if skips:
        tgt = skips[0]
        dY = tgt.shape[2] - up.shape[1]
        dX = tgt.shape[3] - up.shape[2]
        up = jnp.pad(up, ((0, 0), (dY // 2, dY - dY // 2),
                          (dX // 2, dX - dX // 2), (0, 0)))
        x = jnp.concatenate(
            [jnp.transpose(s, (0, 2, 3, 1)).astype(jnp.bfloat16) for s in skips]
            + [up], axis=-1)
    else:
        x = up
    # DoubleConv (Dropout2d(p=0.0) is the identity and therefore omitted)
    return double_conv(x, params)


def init_params(key, up_in_ch, conv_in_ch, out_ch):
    ks = jax.random.split(key, 8)
    f32 = jnp.float32
    return {
        "up_w": 0.1 * jax.random.normal(ks[0], (up_in_ch, up_in_ch // 2, 2, 2), f32),
        "up_b": 0.1 * jax.random.normal(ks[1], (up_in_ch // 2,), f32),
        "conv1_w": 0.1 * jax.random.normal(ks[2], (out_ch, conv_in_ch, 3, 3), f32),
        "bn1_gamma": 1.0 + 0.1 * jax.random.normal(ks[3], (out_ch,), f32),
        "bn1_beta": 0.1 * jax.random.normal(ks[4], (out_ch,), f32),
        "conv2_w": 0.1 * jax.random.normal(ks[5], (out_ch, out_ch, 3, 3), f32),
        "bn2_gamma": 1.0 + 0.1 * jax.random.normal(ks[6], (out_ch,), f32),
        "bn2_beta": 0.1 * jax.random.normal(ks[7], (out_ch,), f32),
    }


if __name__ == "__main__":
    key = jax.random.PRNGKey(0)
    kp, kx, ks = jax.random.split(key, 3)

    up_in_ch, skip_ch, out_ch = 8, 4, 8
    conv_in_ch = skip_ch + up_in_ch // 2      # channels after concat

    params = init_params(kp, up_in_ch, conv_in_ch, out_ch)
    x1 = jax.random.normal(kx, (2, up_in_ch, 8, 8), jnp.float32)     # NCHW
    skip = jax.random.normal(ks, (2, skip_ch, 16, 16), jnp.float32)  # NCHW

    out = upsample_forward(params, x1, skip)
    out = jax.block_until_ready(out)
    assert out.shape == (2, out_ch, 16, 16), out.shape
    assert bool(jnp.all(jnp.isfinite(out)))
    print("KERNEL_OK")
</pallas_src>

<mosaic_0001>
module attributes {stable_mosaic.version = 11 : i64} {
  func.func @_matmul_bias_kernel(%arg0: i32, %arg1: memref<128x128xbf16, #tpu.memory_space<vmem>>, %arg2: memref<128x128xbf16, #tpu.memory_space<vmem>>, %arg3: memref<1x128xf32, #tpu.memory_space<vmem>>, %arg4: memref<128x128xbf16, #tpu.memory_space<vmem>>) attributes {dimension_semantics = [#tpu.dimension_semantics<parallel>], iteration_bounds = array<i64: 1>, scalar_prefetch = 0 : i64, scratch_operands = 0 : i64, tpu.core_type = #tpu.core_type<tc>, window_params = [{transform_indices = @transform_0, window_bounds = array<i64: 128, 128>}, {pipeline_mode = #tpu.pipeline_mode<synchronous>, transform_indices = @transform_1, window_bounds = array<i64: 128, 128>}, {pipeline_mode = #tpu.pipeline_mode<synchronous>, transform_indices = @transform_2, window_bounds = array<i64: 1, 128>}, {transform_indices = @transform_3, window_bounds = array<i64: 128, 128>}]} {
    %c0 = arith.constant 0 : index
    %c0_0 = arith.constant 0 : index
    %0 = vector.load %arg1[%c0, %c0_0] : memref<128x128xbf16, #tpu.memory_space<vmem>>, vector<128x128xbf16>
    %c0_1 = arith.constant 0 : index
    %c0_2 = arith.constant 0 : index
    %1 = vector.load %arg2[%c0_1, %c0_2] : memref<128x128xbf16, #tpu.memory_space<vmem>>, vector<128x128xbf16>
    %cst = arith.constant dense<0.000000e+00> : vector<128x128xf32>
    %2 = tpu.matmul %0, %1, %cst {dimension_numbers = #tpu.dot_dimension_numbers<[1], [0], [0], [1], [0, 0, 1, 1], [], []>} : vector<128x128xbf16>, vector<128x128xbf16>, vector<128x128xf32> -> vector<128x128xf32>
    %c0_3 = arith.constant 0 : index
    %c0_4 = arith.constant 0 : index
    %3 = vector.load %arg3[%c0_3, %c0_4] : memref<1x128xf32, #tpu.memory_space<vmem>>, vector<1x128xf32>
    %4 = vector.broadcast %3 : vector<1x128xf32> to vector<128x128xf32>
    %5 = arith.addf %2, %4 : vector<128x128xf32>
    %6 = arith.truncf %5 : vector<128x128xf32> to vector<128x128xbf16>
    %c0_5 = arith.constant 0 : index
    %c0_6 = arith.constant 0 : index
    %7 = vector.load %arg4[%c0_5, %c0_6] : memref<128x128xbf16, #tpu.memory_space<vmem>>, vector<128x128xbf16>
    tpu.vector_store %arg4[%c0_5, %c0_6], %6 {strides = array<i32>} : memref<128x128xbf16, #tpu.memory_space<vmem>>, vector<128x128xbf16>,
    return
  }
  func.func @transform_0(%arg0: i32) -> (i32, i32) {
    %c0_i32 = arith.constant 0 : i32
    %c0_i32_0 = arith.constant 0 : i32
    return %arg0, %c0_i32 : i32, i32
  }
  func.func @transform_1(%arg0: i32) -> (i32, i32) {
    %c0_i32 = arith.constant 0 : i32
    %c0_i32_0 = arith.constant 0 : i32
    %c0_i32_1 = arith.constant 0 : i32
    return %c0_i32, %c0_i32_0 : i32, i32
  }
  func.func @transform_2(%arg0: i32) -> (i32, i32) {
    %c0_i32 = arith.constant 0 : i32
    %c0_i32_0 = arith.constant 0 : i32
    %c0_i32_1 = arith.constant 0 : i32
    return %c0_i32, %c0_i32_0 : i32, i32
  }
  func.func @transform_3(%arg0: i32) -> (i32, i32) {
    %c0_i32 = arith.constant 0 : i32
    %c0_i32_0 = arith.constant 0 : i32
    return %arg0, %c0_i32 : i32, i32
  }
}

</mosaic_0001>

<llo_original>
// kernel: tpu_custom_call.1
$region0: #{tpu_custom_call.1}
  #allocation0 [shape = 'u32[]', space=smem, size = 0x4, offset = 0x4, fixed_abs, tag = 'smem constant byte address 0x4 - core index']
  #allocation1 [shape = 'u32[144,128]{1,0:T(1,128)}', space=vmem, size = 0x12000, scoped, tag = 'internal scratch']
  %s0 = inlined_call_operand.hbm [shape: bf16[128,128], index: 0, kind: input, shape index: {}]
  %s1 = inlined_call_operand.hbm [shape: bf16[128,128], index: 1, kind: input, shape index: {}]
  %s2 = inlined_call_operand.vmem [shape: f32[1,128], index: 2, kind: input, shape index: {}]
  %s3 = inlined_call_operand.hbm [shape: bf16[128,128], index: 3, kind: output, shape index: {}]
  %s4 = sld [smem:[#allocation0]]
  $region30: #{tpu_custom_call.1} parent=0
    _
  %s6 = ssub.s32 1, %s4
  %s7 = scalar_select 0, %s6, %s4
  $region1: #{tpu_custom_call.1} parent=0
    #allocation2 [shape = 'u8[32768]{0}', space=vmem, size = 0x8000, scoped, tag = 'input window, operand 0, single buffered']
    #allocation3 [shape = 's32[1]{0}', space=sflag, size = 0x4, scoped, tag = 'scoped memory for tpu_custom_call.1']
    #allocation4 [shape = 's32[1]{0}', space=sflag, size = 0x4, scoped, tag = 'scoped memory for tpu_custom_call.1']
    #allocation5 [shape = 'u8[32768]{0}', space=vmem, size = 0x8000, scoped, tag = 'input window, operand 1, single buffered']
    #allocation6 [shape = 's32[1]{0}', space=sflag, size = 0x4, scoped, tag = 'scoped memory for tpu_custom_call.1']
    #allocation7 [shape = 'u8[32768]{0}', space=vmem, size = 0x8000, scoped, tag = 'output window, operand 0, single buffered']
    %8 = vsyncpa [#allocation3], 0
    %9 = vsyncpa [#allocation6], 0
    %10 = vsyncpa [#allocation4], 0
    // Predicated region
    $region2: #{tpu_custom_call.1} parent=1 // pred_check
      _
    $region3: #{tpu_custom_call.1} parent=1 // pred_check_branch
      %12 = sbr.rel (0) target = $region5
    $region4: #{tpu_custom_call.1} parent=1 // pred_region
      %s14 = ssub.s32 1024, 1024
      %15 = vsyncadd [#allocation3], %s14
      %s16 = sshll.u32 [#allocation2], 4
      %s17 = int_to_ptr.vmem [resolvable:$true] %s16
      %22 = dma.hbm_to_vmem [thread:$0]  %s0, 1024, %s17, [#allocation3], 64, 64, 4
    $region5: #{tpu_custom_call.1} parent=1 // pred_fallthru
      _
    // Predicated region
    $region6: #{tpu_custom_call.1} parent=1 // pred_check
      _
    $region7: #{tpu_custom_call.1} parent=1 // pred_check_branch
      %24 = sbr.rel (0) target = $region9
    $region8: #{tpu_custom_call.1} parent=1 // pred_region
      %s26 = ssub.s32 1024, 1024
      %27 = vsyncadd [#allocation6], %s26
      %s28 = sshll.u32 [#allocation5], 4
      %s29 = int_to_ptr.vmem [resolvable:$true] %s28
      %34 = dma.hbm_to_vmem [thread:$0]  %s1, 1024, %s29, [#allocation6], 64, 64, 4
    $region9: #{tpu_custom_call.1} parent=1 // pred_fallthru
      _
    // Predicated region
    $region10: #{tpu_custom_call.1} parent=1 // pred_check
      _
    $region11: #{tpu_custom_call.1} parent=1 // pred_check_branch
      %36 = sbr.rel (0) target = $region13
    $region12: #{tpu_custom_call.1} parent=1 // pred_region
      _
    $region13: #{tpu_custom_call.1} parent=1 // pred_fallthru
      _
    // Predicated region
    $region14: #{tpu_custom_call.1} parent=1 // pred_check
      _
    $region15: #{tpu_custom_call.1} parent=1 // pred_check_branch
      %38 = sbr.rel (0) target = $region17
    $region16: #{tpu_custom_call.1} parent=1 // pred_region
      %39 = dma.done [#allocation3], 1024
    $region17: #{tpu_custom_call.1} parent=1 // pred_fallthru
      _
    // Predicated region
    $region18: #{tpu_custom_call.1} parent=1 // pred_check
      _
    $region19: #{tpu_custom_call.1} parent=1 // pred_check_branch
      %41 = sbr.rel (0) target = $region21
    $region20: #{tpu_custom_call.1} parent=1 // pred_region
      %42 = dma.done [#allocation6], 1024
    $region21: #{tpu_custom_call.1} parent=1 // pred_fallthru
      _
    %v44 = vld [vmem:[#allocation2] sm:$0xf]
    %v45 = vld [vmem:[#allocation2 + $0x4] sm:$0xf]
    %v46 = vld [vmem:[#allocation2 + $0x8] sm:$0xf]
    %v47 = vld [vmem:[#allocation2 + $0xc] sm:$0xf]
    %v48 = vld [vmem:[#allocation2 + $0x10] sm:$0xf]
    %v49 = vld [vmem:[#allocation2 + $0x14] sm:$0xf]
    %v50 = vld [vmem:[#allocation2 + $0x18] sm:$0xf]
    %v51 = vld [vmem:[#allocation2 + $0x1c] sm:$0xf]
    %v52 = vld [vmem:[#allocation2 + $0x20] sm:$0xf]
    %v53 = vld [vmem:[#allocation2 + $0x24] sm:$0xf]
    %v54 = vld [vmem:[#allocation2 + $0x28] sm:$0xf]
    %v55 = vld [vmem:[#allocation2 + $0x2c] sm:$0xf]
    %v56 = vld [vmem:[#allocation2 + $0x30] sm:$0xf]
    %v57 = vld [vmem:[#allocation2 + $0x34] sm:$0xf]
    %v58 = vld [vmem:[#allocation2 + $0x38] sm:$0xf]
    %v59 = vld [vmem:[#allocation2 + $0x3c] sm:$0xf]
    %v60 = vld [vmem:[#allocation5] sm:$0xf]
    %v61 = vld [vmem:[#allocation5 + $0x4] sm:$0xf]
    %v62 = vld [vmem:[#allocation5 + $0x8] sm:$0xf]
    %v63 = vld [vmem:[#allocation5 + $0xc] sm:$0xf]
    %v64 = vld [vmem:[#allocation5 + $0x10] sm:$0xf]
    %v65 = vld [vmem:[#allocation5 + $0x14] sm:$0xf]
    %v66 = vld [vmem:[#allocation5 + $0x18] sm:$0xf]
    %v67 = vld [vmem:[#allocation5 + $0x1c] sm:$0xf]
    %v68 = vld [vmem:[#allocation5 + $0x20] sm:$0xf]
    %v69 = vld [vmem:[#allocation5 + $0x24] sm:$0xf]
    %v70 = vld [vmem:[#allocation5 + $0x28] sm:$0xf]
    %v71 = vld [vmem:[#allocation5 + $0x2c] sm:$0xf]
    %v72 = vld [vmem:[#allocation5 + $0x30] sm:$0xf]
    %v73 = vld [vmem:[#allocation5 + $0x34] sm:$0xf]
    %v74 = vld [vmem:[#allocation5 + $0x38] sm:$0xf]
    %v75 = vld [vmem:[#allocation5 + $0x3c] sm:$0xf]
    %v76 = vld [vmem:[%s2] sm:$0x1]
    %v78 = vlaneseq
    %v79 = vshrl.u32 %v78, 7
    %v80 = vsub.s32 0, %v79
    %v81 = vrot.slane %v76, %v80
    %v99 = vunpack.c.l.b16 %v44
    %v100 = vunpack.c.l.b16 %v45
    %v101 = vunpack.c.l.b16 %v46
    %v102 = vunpack.c.l.b16 %v47
    %v103 = vunpack.c.l.b16 %v48
    %v104 = vunpack.c.l.b16 %v49
    %v105 = vunpack.c.l.b16 %v50
    %v106 = vunpack.c.l.b16 %v51
    %v107 = vunpack.c.l.b16 %v52
    %v108 = vunpack.c.l.b16 %v53
    %v109 = vunpack.c.l.b16 %v54
    %v110 = vunpack.c.l.b16 %v55
    %v111 = vunpack.c.l.b16 %v56
    %v112 = vunpack.c.l.b16 %v57
    %v113 = vunpack.c.l.b16 %v58
    %v114 = vunpack.c.l.b16 %v59
    %v115 = vpack.c.b16 %v100, %v99
    %v116 = vpack.c.b16 %v102, %v101
    %v117 = vpack.c.b16 %v104, %v103
    %v118 = vpack.c.b16 %v106, %v105
    %v119 = vpack.c.b16 %v108, %v107
    %v120 = vpack.c.b16 %v110, %v109
    %v121 = vpack.c.b16 %v112, %v111
    %v122 = vpack.c.b16 %v114, %v113
    %v147 = vunpack.c.l.b16 %v60
    %v148 = vunpack.c.l.b16 %v61
    %v149 = vunpack.c.l.b16 %v62
    %v150 = vunpack.c.l.b16 %v63
    %v151 = vunpack.c.l.b16 %v64
    %v152 = vunpack.c.l.b16 %v65
    %v153 = vunpack.c.l.b16 %v66
    %v154 = vunpack.c.l.b16 %v67
    %v155 = vunpack.c.l.b16 %v68
    %v156 = vunpack.c.l.b16 %v69
    %v157 = vunpack.c.l.b16 %v70
    %v158 = vunpack.c.l.b16 %v71
    %v159 = vunpack.c.l.b16 %v72
    %v160 = vunpack.c.l.b16 %v73
    %v161 = vunpack.c.l.b16 %v74
    %v162 = vunpack.c.l.b16 %v75
    %v163 = vpack.c.b16 %v148, %v147
    %v164 = vpack.c.b16 %v150, %v149
    %v165 = vpack.c.b16 %v152, %v151
    %v166 = vpack.c.b16 %v154, %v153
    %v167 = vpack.c.b16 %v156, %v155
    %v168 = vpack.c.b16 %v158, %v157
    %v169 = vpack.c.b16 %v160, %v159
    %v170 = vpack.c.b16 %v162, %v161
    %179 = vmatprep.subr.bf16.mxu0 0
    %180 = vmatpush1.bf16.msra.mxu0 %v163
    %181 = vmatprep.subr.bf16.mxu0 0
    %182 = vmatpush1.bf16.msra.mxu0 %v164
    %183 = vmatprep.subr.bf16.mxu0 0
    %184 = vmatpush1.bf16.msra.mxu0 %v165
    %185 = vmatprep.subr.bf16.mxu0 0
    %186 = vmatpush1.bf16.msra.mxu0 %v166
    %187 = vmatprep.subr.bf16.mxu0 0
    %188 = vmatpush1.bf16.msra.mxu0 %v167
    %189 = vmatprep.subr.bf16.mxu0 0
    %190 = vmatpush1.bf16.msra.mxu0 %v168
    %191 = vmatprep.subr.bf16.mxu0 0
    %192 = vmatpush1.bf16.msra.mxu0 %v169
    %193 = vmatprep.subr.bf16.mxu0 0
    %194 = vmatpush1.bf16.msra.mxu0 %v170
    %195 = vmatprep.subr.bf16.mxu0 0
    %196 = vmatpush1.bf16.msra.mxu0 0
    %197 = vmatprep.subr.bf16.mxu0 0
    %198 = vmatpush1.bf16.msra.mxu0 0
    %199 = vmatprep.subr.bf16.mxu0 0
    %200 = vmatpush1.bf16.msra.mxu0 0
    %201 = vmatprep.subr.bf16.mxu0 0
    %202 = vmatpush1.bf16.msra.mxu0 0
    %203 = vmatprep.subr.bf16.mxu0 0
    %204 = vmatpush1.bf16.msra.mxu0 0
    %205 = vmatprep.subr.bf16.mxu0 0
    %206 = vmatpush1.bf16.msra.mxu0 0
    %207 = vmatprep.subr.bf16.mxu0 0
    %208 = vmatpush1.bf16.msra.mxu0 0
    %209 = vmatprep.subr.bf16.mxu0 0
    %210 = vmatpush1.bf16.msra.mxu0 0
    %211 = vmatprep.mubr.bf16.mxu0 0
    %212 = vmatmul.mubr.bf16.gmra.mrb[0].mxu0 %v115
    %v213 = vpop.f32.mrb[0].mxu0
    %v214 = vadd.f32 %v81, %v213
    %v215 = vpop.f32.mrb[0].mxu0
    %v216 = vpop.f32.mrb[0].mxu0
    %v217 = vadd.f32 %v81, %v216
    %v218 = vpop.f32.mrb[0].mxu0
    %219 = vmatprep.mubr.bf16.mxu0 0
    %220 = vmatmul.mubr.bf16.gmra.mrb[0].mxu0 %v116
    %v221 = vpop.f32.mrb[0].mxu0
    %v222 = vadd.f32 %v81, %v221
    %v223 = vpop.f32.mrb[0].mxu0
    %v224 = vpop.f32.mrb[0].mxu0
    %v225 = vadd.f32 %v81, %v224
    %v226 = vpop.f32.mrb[0].mxu0
    %227 = vmatprep.mubr.bf16.mxu0 0
    %228 = vmatmul.mubr.bf16.gmra.mrb[0].mxu0 %v117
    %v229 = vpop.f32.mrb[0].mxu0
    %v230 = vadd.f32 %v81, %v229
    %v231 = vpop.f32.mrb[0].mxu0
    %v232 = vpop.f32.mrb[0].mxu0
    %v233 = vadd.f32 %v81, %v232
    %v234 = vpop.f32.mrb[0].mxu0
    %235 = vmatprep.mubr.bf16.mxu0 0
    %236 = vmatmul.mubr.bf16.gmra.mrb[0].mxu0 %v118
    %v237 = vpop.f32.mrb[0].mxu0
    %v238 = vadd.f32 %v81, %v237
    %v239 = vpop.f32.mrb[0].mxu0
    %v240 = vpop.f32.mrb[0].mxu0
    %v241 = vadd.f32 %v81, %v240
    %v242 = vpop.f32.mrb[0].mxu0
    %243 = vmatprep.mubr.bf16.mxu0 0
    %244 = vmatmul.mubr.bf16.gmra.mrb[0].mxu0 %v119
    %v245 = vpop.f32.mrb[0].mxu0
    %v246 = vadd.f32 %v81, %v245
    %v247 = vpop.f32.mrb[0].mxu0
    %v248 = vpop.f32.mrb[0].mxu0
    %v249 = vadd.f32 %v81, %v248
    %v250 = vpop.f32.mrb[0].mxu0
    %251 = vmatprep.mubr.bf16.mxu0 0
    %252 = vmatmul.mubr.bf16.gmra.mrb[0].mxu0 %v120
    %v253 = vpop.f32.mrb[0].mxu0
    %v254 = vadd.f32 %v81, %v253
    %v255 = vpop.f32.mrb[0].mxu0
    %v256 = vpop.f32.mrb[0].mxu0
    %v257 = vadd.f32 %v81, %v256
    %v258 = vpop.f32.mrb[0].mxu0
    %259 = vmatprep.mubr.bf16.mxu0 0
    %260 = vmatmul.mubr.bf16.gmra.mrb[0].mxu0 %v121
    %v261 = vpop.f32.mrb[0].mxu0
    %v262 = vadd.f32 %v81, %v261
    %v263 = vpop.f32.mrb[0].mxu0
    %v264 = vpop.f32.mrb[0].mxu0
    %v265 = vadd.f32 %v81, %v264
    %v266 = vpop.f32.mrb[0].mxu0
    %267 = vmatprep.mubr.bf16.mxu0 0
    %268 = vmatmul.mubr.bf16.gmra.mrb[0].mxu0 %v122
    %v269 = vpop.f32.mrb[0].mxu0
    %v270 = vadd.f32 %v81, %v269
    %v271 = vpop.f32.mrb[0].mxu0
    %v272 = vpop.f32.mrb[0].mxu0
    %v273 = vadd.f32 %v81, %v272
    %v274 = vpop.f32.mrb[0].mxu0
    %275 = vdwg.mxu0
    %v276 = vpack.c.bf16 %v217, %v214
    %v277 = vpack.c.bf16 %v225, %v222
    %v278 = vpack.c.bf16 %v233, %v230
    %v279 = vpack.c.bf16 %v241, %v238
    %v280 = vpack.c.bf16 %v249, %v246
    %v281 = vpack.c.bf16 %v257, %v254
    %v282 = vpack.c.bf16 %v265, %v262
    %v283 = vpack.c.bf16 %v273, %v270
    %v292 = vunpack.c.l.b16 %v276
    %v293 = vunpack.c.h.b16 %v276
    %v294 = vunpack.c.l.b16 %v277
    %v295 = vunpack.c.h.b16 %v277
    %v296 = vunpack.c.l.b16 %v278
    %v297 = vunpack.c.h.b16 %v278
    %v298 = vunpack.c.l.b16 %v279
    %v299 = vunpack.c.h.b16 %v279
    %v300 = vunpack.c.l.b16 %v280
    %v301 = vunpack.c.h.b16 %v280
    %v302 = vunpack.c.l.b16 %v281
    %v303 = vunpack.c.h.b16 %v281
    %v304 = vunpack.c.l.b16 %v282
    %v305 = vunpack.c.h.b16 %v282
    %v306 = vunpack.c.l.b16 %v283
    %v307 = vunpack.c.h.b16 %v283
    %v308 = vpack.c.b16 %v292, %v292
    %v309 = vpack.c.b16 %v293, %v293
    %v310 = vpack.c.b16 %v294, %v294
    %v311 = vpack.c.b16 %v295, %v295
    %v312 = vpack.c.b16 %v296, %v296
    %v313 = vpack.c.b16 %v297, %v297
    %v314 = vpack.c.b16 %v298, %v298
    %v315 = vpack.c.b16 %v299, %v299
    %v316 = vpack.c.b16 %v300, %v300
    %v317 = vpack.c.b16 %v301, %v301
    %v318 = vpack.c.b16 %v302, %v302
    %v319 = vpack.c.b16 %v303, %v303
    %v320 = vpack.c.b16 %v304, %v304
    %v321 = vpack.c.b16 %v305, %v305
    %v322 = vpack.c.b16 %v306, %v306
    %v323 = vpack.c.b16 %v307, %v307
    %340 = vst [vmem:[#allocation7] sm:$0xf] %v308
    %341 = vst [vmem:[#allocation7 + $0x4] sm:$0xf] %v309
    %342 = vst [vmem:[#allocation7 + $0x8] sm:$0xf] %v310
    %343 = vst [vmem:[#allocation7 + $0xc] sm:$0xf] %v311
    %344 = vst [vmem:[#allocation7 + $0x10] sm:$0xf] %v312
    %345 = vst [vmem:[#allocation7 + $0x14] sm:$0xf] %v313
    %346 = vst [vmem:[#allocation7 + $0x18] sm:$0xf] %v314
    %347 = vst [vmem:[#allocation7 + $0x1c] sm:$0xf] %v315
    %348 = vst [vmem:[#allocation7 + $0x20] sm:$0xf] %v316
    %349 = vst [vmem:[#allocation7 + $0x24] sm:$0xf] %v317
    %350 = vst [vmem:[#allocation7 + $0x28] sm:$0xf] %v318
    %351 = vst [vmem:[#allocation7 + $0x2c] sm:$0xf] %v319
    %352 = vst [vmem:[#allocation7 + $0x30] sm:$0xf] %v320
    %353 = vst [vmem:[#allocation7 + $0x34] sm:$0xf] %v321
    %354 = vst [vmem:[#allocation7 + $0x38] sm:$0xf] %v322
    %355 = vst [vmem:[#allocation7 + $0x3c] sm:$0xf] %v323
    // Predicated region
    $region22: #{tpu_custom_call.1} parent=1 // pred_check
      _
    $region23: #{tpu_custom_call.1} parent=1 // pred_check_branch
      %357 = sbr.rel (0) target = $region25
    $region24: #{tpu_custom_call.1} parent=1 // pred_region
      %s359 = ssub.s32 1024, 1024
      %360 = vsyncadd [#allocation4], %s359
      %s361 = sshll.u32 [#allocation7], 4
      %s362 = int_to_ptr.vmem [resolvable:$true] %s361
      %367 = dma.vmem_to_hbm [thread:$0]  %s362, 1024, %s3, [#allocation4], 64, 64, 4
    $region25: #{tpu_custom_call.1} parent=1 // pred_fallthru
      _
    // Predicated region
    $region26: #{tpu_custom_call.1} parent=1 // pred_check
      _
    $region27: #{tpu_custom_call.1} parent=1 // pred_check_branch
      %369 = sbr.rel (0) target = $region29
    $region28: #{tpu_custom_call.1} parent=1 // pred_region
      %370 = dma.done [#allocation4], 1024
    $region29: #{tpu_custom_call.1} parent=1 // pred_fallthru
      _
    %371 = vsyncpa [#allocation3], 1
    %372 = vsyncpa [#allocation6], 1
    %373 = vsyncpa [#allocation4], 1

</llo_original>
